<compile_context>
chip_gen: v7x
topology: tpu7x:2x2x1
jax: 0.10.0
libtpu: 0.0.40
codegen_flags: <defaults>
</compile_context>

<pallas_src>
import functools

import jax
import jax.numpy as jnp
from jax.experimental import pallas as pl
from jax.experimental.pallas import tpu as pltpu


def _temporal_block_kernel(x_ref, v1_ref, g1_ref, b1_ref, v2_ref, g2_ref,
                           b2_ref, wd_ref, bd_ref, out_ref, *, kernel_size,
                           dilation, has_downsample):
    """One batch element per grid step: x_ref (1,c_in,T), out_ref (1,c_out,T)."""
    _, c_in, T = x_ref.shape
    c_out = out_ref.shape[1]
    K, d = kernel_size, dilation

    # ---- weight norm: w = g * v * rsqrt(sum v^2)  (per output channel) ----
    v1 = v1_ref[...]                                   # (K, c_out, c_in)
    v2 = v2_ref[...]                                   # (K, c_out, c_out)
    sq1 = jnp.zeros((c_out, 1), jnp.float32)
    sq2 = jnp.zeros((c_out, 1), jnp.float32)
    for k in range(K):
        sq1 = sq1 + jnp.sum(v1[k] * v1[k], axis=-1, keepdims=True)
        sq2 = sq2 + jnp.sum(v2[k] * v2[k], axis=-1, keepdims=True)
    scale1 = g1_ref[...] * jax.lax.rsqrt(sq1)          # (c_out, 1), EUP rsqrt
    scale2 = g2_ref[...] * jax.lax.rsqrt(sq2)
    w1 = [(v1[k] * scale1).astype(jnp.bfloat16) for k in range(K)]
    w2 = [(v2[k] * scale2).astype(jnp.bfloat16) for k in range(K)]
    b1 = b1_ref[...]                                   # (c_out, 1) f32
    b2 = b2_ref[...]                                   # (c_out, 1) f32

    x_f32 = x_ref[0]                                   # (c_in, T) f32
    x_bf = x_f32.astype(jnp.bfloat16)

    # lane (time) index within this batch segment, for the causal masks
    tidx = jax.lax.broadcasted_iota(jnp.int32, (c_out, T), 1)

    def causal_conv(inp_bf, weights, bias):
        # out[:, t] = sum_k w_k @ inp[:, t - (K-1-k)*d], zeros for t' < 0.
        acc = jnp.zeros((c_out, T), jnp.float32)
        for k in range(K):
            p = jnp.dot(weights[k], inp_bf,
                        preferred_element_type=jnp.float32)   # (c_out, T)
            s = (K - 1 - k) * d
            if s:
                p = jnp.where(tidx >= s, pltpu.roll(p, shift=s, axis=1), 0.0)
            acc = acc + p
        return acc + bias

    # conv1 -> chomp -> ReLU   (dropout1 == identity in eval mode)
    h1 = jnp.maximum(causal_conv(x_bf, w1, b1), 0.0)
    # conv2 -> chomp -> ReLU   (dropout2 == identity in eval mode)
    h2 = jnp.maximum(causal_conv(h1.astype(jnp.bfloat16), w2, b2), 0.0)

    # residual branch: 1x1 conv when channel counts differ, else identity
    if has_downsample:
        res = jnp.dot(wd_ref[...].astype(jnp.bfloat16), x_bf,
                      preferred_element_type=jnp.float32) + bd_ref[...]
    else:
        res = x_f32

    out_ref[0] = jnp.maximum(h2 + res, 0.0)


def temporal_block_forward(x, params, *, kernel_size, stride, dilation,
                           padding):
    """Pallas equivalent of TemporalBlock.forward (inference mode)."""
    v1, g1, b1, v2, g2, b2, wd, bd = params
    B, c_in, T = x.shape
    c_out = v1.shape[0]
    assert stride == 1, "kernel implements the stride=1 TCN configuration"
    assert padding == (kernel_size - 1) * dilation, (
        "causal padding must equal (kernel_size - 1) * dilation")
    has_downsample = wd is not None
    K = kernel_size

    # Lane-dense time axis: pad T up to a multiple of 128.  The conv is
    # strictly causal (only looks left), so the zero tail never leaks into
    # the first T columns; it is sliced off below.
    Tp = ((T + 127) // 128) * 128
    x_p = x.astype(jnp.float32)
    if Tp != T:
        x_p = jnp.pad(x_p, ((0, 0), (0, 0), (0, Tp - T)))

    # Kernel-friendly layouts: tap index leading (static per-tap indexing),
    # per-channel vectors as (c_out, 1) columns (broadcast along lanes).
    v1_t = jnp.transpose(v1, (2, 0, 1)).astype(jnp.float32)   # (K, c_out, c_in)
    v2_t = jnp.transpose(v2, (2, 0, 1)).astype(jnp.float32)   # (K, c_out, c_out)
    g1_c = g1.reshape(c_out, 1).astype(jnp.float32)
    g2_c = g2.reshape(c_out, 1).astype(jnp.float32)
    b1_c = b1.reshape(c_out, 1).astype(jnp.float32)
    b2_c = b2.reshape(c_out, 1).astype(jnp.float32)
    if has_downsample:
        wd_m = wd.reshape(c_out, c_in).astype(jnp.float32)
        bd_c = bd.reshape(c_out, 1).astype(jnp.float32)
    else:
        wd_m = jnp.zeros((1, 1), jnp.float32)   # unused dummies
        bd_c = jnp.zeros((1, 1), jnp.float32)

    flops = 2 * B * Tp * K * c_out * (c_in + c_out)
    if has_downsample:
        flops += 2 * B * Tp * c_out * c_in
    bytes_accessed = 4 * (B * c_in * Tp + B * c_out * Tp
                          + v1_t.size + v2_t.size + wd_m.size
                          + g1_c.size + g2_c.size + b1_c.size + b2_c.size
                          + bd_c.size)

    kernel = functools.partial(
        _temporal_block_kernel, kernel_size=K, dilation=dilation,
        has_downsample=has_downsample)

    def replicated(shape):
        n = len(shape)
        return pl.BlockSpec(shape, lambda b, _n=n: (0,) * _n)

    out_p = pl.pallas_call(
        kernel,
        out_shape=jax.ShapeDtypeStruct((B, c_out, Tp), jnp.float32),
        grid=(B,),
        in_specs=[
            pl.BlockSpec((1, c_in, Tp), lambda b: (b, 0, 0)),   # x: one batch
            replicated(v1_t.shape), replicated(g1_c.shape),
            replicated(b1_c.shape),
            replicated(v2_t.shape), replicated(g2_c.shape),
            replicated(b2_c.shape),
            replicated(wd_m.shape), replicated(bd_c.shape),
        ],
        out_specs=pl.BlockSpec((1, c_out, Tp), lambda b: (b, 0, 0)),
        compiler_params=pltpu.CompilerParams(
            dimension_semantics=("parallel",)),
        cost_estimate=pl.CostEstimate(flops=flops, transcendentals=0,
                                      bytes_accessed=bytes_accessed),
    )(x_p, v1_t, g1_c, b1_c, v2_t, g2_c, b2_c, wd_m, bd_c)

    return out_p if Tp == T else out_p[:, :, :T]


def init_params(key, n_inputs, n_outputs, kernel_size):
    """Deterministic parameters matching the module's parameter set:
    weight-norm (v, g) + bias for conv1/conv2, plain weight/bias for the
    optional 1x1 downsample conv (None when n_inputs == n_outputs)."""
    ks = jax.random.split(key, 8)
    v1 = 0.1 * jax.random.normal(ks[0], (n_outputs, n_inputs, kernel_size),
                                 jnp.float32)
    g1 = jax.random.uniform(ks[1], (n_outputs,), jnp.float32, 0.5, 1.5)
    b1 = 0.1 * jax.random.normal(ks[2], (n_outputs,), jnp.float32)
    v2 = 0.1 * jax.random.normal(ks[3], (n_outputs, n_outputs, kernel_size),
                                 jnp.float32)
    g2 = jax.random.uniform(ks[4], (n_outputs,), jnp.float32, 0.5, 1.5)
    b2 = 0.1 * jax.random.normal(ks[5], (n_outputs,), jnp.float32)
    if n_inputs != n_outputs:
        wd = 0.1 * jax.random.normal(ks[6], (n_outputs, n_inputs, 1),
                                     jnp.float32)
        bd = 0.1 * jax.random.normal(ks[7], (n_outputs,), jnp.float32)
    else:
        wd, bd = None, None
    return v1, g1, b1, v2, g2, b2, wd, bd


def reference_forward(x, params, *, kernel_size, stride, dilation, padding):
    """Pure-JAX f32 reference mirroring the PyTorch forward (eval mode)."""
    v1, g1, b1, v2, g2, b2, wd, bd = params
    T = x.shape[2]

    def weight_norm(v, g):
        n = jnp.sqrt(jnp.sum(v * v, axis=(1, 2), keepdims=True))
        return g[:, None, None] * v / n

    def conv1d(h, w, b, dil, padd):
        y = jax.lax.conv_general_dilated(
            h, w, window_strides=(stride,), padding=[(padd, padd)],
            rhs_dilation=(dil,), dimension_numbers=("NCH", "OIH", "NCH"),
            precision=jax.lax.Precision.HIGHEST)
        return y + b[None, :, None]

    h = conv1d(x, weight_norm(v1, g1), b1, dilation, padding)[:, :, :T]
    h = jnp.maximum(h, 0.0)
    h = conv1d(h, weight_norm(v2, g2), b2, dilation, padding)[:, :, :T]
    h = jnp.maximum(h, 0.0)
    res = x if wd is None else conv1d(x, wd, bd, 1, 0)
    return jnp.maximum(h + res, 0.0)


if __name__ == "__main__":
    B, T = 2, 128
    n_inputs, n_outputs = 4, 8
    kernel_size, dilation = 3, 2
    stride, padding = 1, (kernel_size - 1) * dilation

    key = jax.random.PRNGKey(0)
    pkey, xkey, pkey2, xkey2 = jax.random.split(key, 4)

    # bf16 MXU inputs with f32 accumulation -> relaxed tolerance vs f32 ref.
    TOL = 5e-2

    # config 1: n_inputs != n_outputs  -> 1x1 downsample residual path
    x = jax.random.normal(xkey, (B, n_inputs, T), jnp.float32)
    params = init_params(pkey, n_inputs, n_outputs, kernel_size)
    out = temporal_block_forward(x, params, kernel_size=kernel_size,
                                 stride=stride, dilation=dilation,
                                 padding=padding)
    jax.block_until_ready(out)
    ref = reference_forward(x, params, kernel_size=kernel_size, stride=stride,
                            dilation=dilation, padding=padding)
    assert out.shape == (B, n_outputs, T)
    assert jnp.allclose(out, ref, atol=TOL, rtol=TOL), (
        float(jnp.max(jnp.abs(out - ref))))

    # config 2: n_inputs == n_outputs  -> identity residual path
    x2 = jax.random.normal(xkey2, (B, n_outputs, T), jnp.float32)
    params_id = init_params(pkey2, n_outputs, n_outputs, kernel_size)
    out2 = temporal_block_forward(x2, params_id, kernel_size=kernel_size,
                                  stride=stride, dilation=dilation,
                                  padding=padding)
    jax.block_until_ready(out2)
    ref2 = reference_forward(x2, params_id, kernel_size=kernel_size,
                             stride=stride, dilation=dilation,
                             padding=padding)
    assert out2.shape == (B, n_outputs, T)
    assert jnp.allclose(out2, ref2, atol=TOL, rtol=TOL), (
        float(jnp.max(jnp.abs(out2 - ref2))))

    print("KERNEL_OK")
</pallas_src>

<mosaic_0001>
module attributes {stable_mosaic.version = 11 : i64} {
  func.func @_temporal_block_kernel(%arg0: i32, %arg1: memref<1x4x128xf32, #tpu.memory_space<vmem>>, %arg2: memref<3x8x4xf32, #tpu.memory_space<vmem>>, %arg3: memref<8x1xf32, #tpu.memory_space<vmem>>, %arg4: memref<8x1xf32, #tpu.memory_space<vmem>>, %arg5: memref<3x8x8xf32, #tpu.memory_space<vmem>>, %arg6: memref<8x1xf32, #tpu.memory_space<vmem>>, %arg7: memref<8x1xf32, #tpu.memory_space<vmem>>, %arg8: memref<8x4xf32, #tpu.memory_space<vmem>>, %arg9: memref<8x1xf32, #tpu.memory_space<vmem>>, %arg10: memref<1x8x128xf32, #tpu.memory_space<vmem>>) attributes {dimension_semantics = [#tpu.dimension_semantics<parallel>], iteration_bounds = array<i64: 2>, scalar_prefetch = 0 : i64, scratch_operands = 0 : i64, tpu.core_type = #tpu.core_type<tc>, window_params = [{transform_indices = @transform_0, window_bounds = array<i64: 1, 4, 128>}, {pipeline_mode = #tpu.pipeline_mode<synchronous>, transform_indices = @transform_1, window_bounds = array<i64: 3, 8, 4>}, {pipeline_mode = #tpu.pipeline_mode<synchronous>, transform_indices = @transform_2, window_bounds = array<i64: 8, 1>}, {pipeline_mode = #tpu.pipeline_mode<synchronous>, transform_indices = @transform_3, window_bounds = array<i64: 8, 1>}, {pipeline_mode = #tpu.pipeline_mode<synchronous>, transform_indices = @transform_4, window_bounds = array<i64: 3, 8, 8>}, {pipeline_mode = #tpu.pipeline_mode<synchronous>, transform_indices = @transform_5, window_bounds = array<i64: 8, 1>}, {pipeline_mode = #tpu.pipeline_mode<synchronous>, transform_indices = @transform_6, window_bounds = array<i64: 8, 1>}, {pipeline_mode = #tpu.pipeline_mode<synchronous>, transform_indices = @transform_7, window_bounds = array<i64: 8, 4>}, {pipeline_mode = #tpu.pipeline_mode<synchronous>, transform_indices = @transform_8, window_bounds = array<i64: 8, 1>}, {transform_indices = @transform_9, window_bounds = array<i64: 1, 8, 128>}]} {
    %c0 = arith.constant 0 : index
    %c0_0 = arith.constant 0 : index
    %c0_1 = arith.constant 0 : index
    %0 = vector.load %arg2[%c0, %c0_0, %c0_1] : memref<3x8x4xf32, #tpu.memory_space<vmem>>, vector<3x8x4xf32>
    %c0_2 = arith.constant 0 : index
    %c0_3 = arith.constant 0 : index
    %c0_4 = arith.constant 0 : index
    %1 = vector.load %arg5[%c0_2, %c0_3, %c0_4] : memref<3x8x8xf32, #tpu.memory_space<vmem>>, vector<3x8x8xf32>
    %cst = arith.constant 0.000000e+00 : f32
    %2 = vector.broadcast %cst : f32 to vector<8x1xf32>
    %cst_5 = arith.constant 0.000000e+00 : f32
    %3 = vector.broadcast %cst_5 : f32 to vector<8x1xf32>
    %4 = vector.extract_strided_slice %0 {offsets = [0, 0, 0], sizes = [1, 8, 4], strides = [1, 1, 1]} : vector<3x8x4xf32> to vector<1x8x4xf32>
    %5 = vector.shape_cast %4 : vector<1x8x4xf32> to vector<8x4xf32>
    %6 = vector.extract_strided_slice %0 {offsets = [0, 0, 0], sizes = [1, 8, 4], strides = [1, 1, 1]} : vector<3x8x4xf32> to vector<1x8x4xf32>
    %7 = vector.shape_cast %6 : vector<1x8x4xf32> to vector<8x4xf32>
    %8 = arith.mulf %5, %7 : vector<8x4xf32>
    %cst_6 = arith.constant dense<0.000000e+00> : vector<8xf32>
    %9 = vector.multi_reduction <add>, %8, %cst_6 [1] : vector<8x4xf32> to vector<8xf32>
    %10 = vector.shape_cast %9 : vector<8xf32> to vector<8x1xf32>
    %11 = arith.addf %2, %10 : vector<8x1xf32>
    %12 = vector.extract_strided_slice %1 {offsets = [0, 0, 0], sizes = [1, 8, 8], strides = [1, 1, 1]} : vector<3x8x8xf32> to vector<1x8x8xf32>
    %13 = vector.shape_cast %12 : vector<1x8x8xf32> to vector<8x8xf32>
    %14 = vector.extract_strided_slice %1 {offsets = [0, 0, 0], sizes = [1, 8, 8], strides = [1, 1, 1]} : vector<3x8x8xf32> to vector<1x8x8xf32>
    %15 = vector.shape_cast %14 : vector<1x8x8xf32> to vector<8x8xf32>
    %16 = arith.mulf %13, %15 : vector<8x8xf32>
    %cst_7 = arith.constant dense<0.000000e+00> : vector<8xf32>
    %17 = vector.multi_reduction <add>, %16, %cst_7 [1] : vector<8x8xf32> to vector<8xf32>
    %18 = vector.shape_cast %17 : vector<8xf32> to vector<8x1xf32>
    %19 = arith.addf %3, %18 : vector<8x1xf32>
    %20 = vector.extract_strided_slice %0 {offsets = [1, 0, 0], sizes = [1, 8, 4], strides = [1, 1, 1]} : vector<3x8x4xf32> to vector<1x8x4xf32>
    %21 = vector.shape_cast %20 : vector<1x8x4xf32> to vector<8x4xf32>
    %22 = vector.extract_strided_slice %0 {offsets = [1, 0, 0], sizes = [1, 8, 4], strides = [1, 1, 1]} : vector<3x8x4xf32> to vector<1x8x4xf32>
    %23 = vector.shape_cast %22 : vector<1x8x4xf32> to vector<8x4xf32>
    %24 = arith.mulf %21, %23 : vector<8x4xf32>
    %cst_8 = arith.constant dense<0.000000e+00> : vector<8xf32>
    %25 = vector.multi_reduction <add>, %24, %cst_8 [1] : vector<8x4xf32> to vector<8xf32>
    %26 = vector.shape_cast %25 : vector<8xf32> to vector<8x1xf32>
    %27 = arith.addf %11, %26 : vector<8x1xf32>
    %28 = vector.extract_strided_slice %1 {offsets = [1, 0, 0], sizes = [1, 8, 8], strides = [1, 1, 1]} : vector<3x8x8xf32> to vector<1x8x8xf32>
    %29 = vector.shape_cast %28 : vector<1x8x8xf32> to vector<8x8xf32>
    %30 = vector.extract_strided_slice %1 {offsets = [1, 0, 0], sizes = [1, 8, 8], strides = [1, 1, 1]} : vector<3x8x8xf32> to vector<1x8x8xf32>
    %31 = vector.shape_cast %30 : vector<1x8x8xf32> to vector<8x8xf32>
    %32 = arith.mulf %29, %31 : vector<8x8xf32>
    %cst_9 = arith.constant dense<0.000000e+00> : vector<8xf32>
    %33 = vector.multi_reduction <add>, %32, %cst_9 [1] : vector<8x8xf32> to vector<8xf32>
    %34 = vector.shape_cast %33 : vector<8xf32> to vector<8x1xf32>
    %35 = arith.addf %19, %34 : vector<8x1xf32>
    %36 = vector.extract_strided_slice %0 {offsets = [2, 0, 0], sizes = [1, 8, 4], strides = [1, 1, 1]} : vector<3x8x4xf32> to vector<1x8x4xf32>
    %37 = vector.shape_cast %36 : vector<1x8x4xf32> to vector<8x4xf32>
    %38 = vector.extract_strided_slice %0 {offsets = [2, 0, 0], sizes = [1, 8, 4], strides = [1, 1, 1]} : vector<3x8x4xf32> to vector<1x8x4xf32>
    %39 = vector.shape_cast %38 : vector<1x8x4xf32> to vector<8x4xf32>
    %40 = arith.mulf %37, %39 : vector<8x4xf32>
    %cst_10 = arith.constant dense<0.000000e+00> : vector<8xf32>
    %41 = vector.multi_reduction <add>, %40, %cst_10 [1] : vector<8x4xf32> to vector<8xf32>
    %42 = vector.shape_cast %41 : vector<8xf32> to vector<8x1xf32>
    %43 = arith.addf %27, %42 : vector<8x1xf32>
    %44 = vector.extract_strided_slice %1 {offsets = [2, 0, 0], sizes = [1, 8, 8], strides = [1, 1, 1]} : vector<3x8x8xf32> to vector<1x8x8xf32>
    %45 = vector.shape_cast %44 : vector<1x8x8xf32> to vector<8x8xf32>
    %46 = vector.extract_strided_slice %1 {offsets = [2, 0, 0], sizes = [1, 8, 8], strides = [1, 1, 1]} : vector<3x8x8xf32> to vector<1x8x8xf32>
    %47 = vector.shape_cast %46 : vector<1x8x8xf32> to vector<8x8xf32>
    %48 = arith.mulf %45, %47 : vector<8x8xf32>
    %cst_11 = arith.constant dense<0.000000e+00> : vector<8xf32>
    %49 = vector.multi_reduction <add>, %48, %cst_11 [1] : vector<8x8xf32> to vector<8xf32>
    %50 = vector.shape_cast %49 : vector<8xf32> to vector<8x1xf32>
    %51 = arith.addf %35, %50 : vector<8x1xf32>
    %c0_12 = arith.constant 0 : index
    %c0_13 = arith.constant 0 : index
    %52 = vector.load %arg3[%c0_12, %c0_13] : memref<8x1xf32, #tpu.memory_space<vmem>>, vector<8x1xf32>
    %53 = math.rsqrt %43 : vector<8x1xf32>
    %54 = arith.mulf %52, %53 : vector<8x1xf32>
    %c0_14 = arith.constant 0 : index
    %c0_15 = arith.constant 0 : index
    %55 = vector.load %arg6[%c0_14, %c0_15] : memref<8x1xf32, #tpu.memory_space<vmem>>, vector<8x1xf32>
    %56 = math.rsqrt %51 : vector<8x1xf32>
    %57 = arith.mulf %55, %56 : vector<8x1xf32>
    %58 = vector.extract_strided_slice %0 {offsets = [0, 0, 0], sizes = [1, 8, 4], strides = [1, 1, 1]} : vector<3x8x4xf32> to vector<1x8x4xf32>
    %59 = vector.shape_cast %58 : vector<1x8x4xf32> to vector<8x4xf32>
    %60 = vector.broadcast %54 : vector<8x1xf32> to vector<8x4xf32>
    %61 = arith.mulf %59, %60 : vector<8x4xf32>
    %62 = arith.truncf %61 : vector<8x4xf32> to vector<8x4xbf16>
    %63 = vector.extract_strided_slice %0 {offsets = [1, 0, 0], sizes = [1, 8, 4], strides = [1, 1, 1]} : vector<3x8x4xf32> to vector<1x8x4xf32>
    %64 = vector.shape_cast %63 : vector<1x8x4xf32> to vector<8x4xf32>
    %65 = vector.broadcast %54 : vector<8x1xf32> to vector<8x4xf32>
    %66 = arith.mulf %64, %65 : vector<8x4xf32>
    %67 = arith.truncf %66 : vector<8x4xf32> to vector<8x4xbf16>
    %68 = vector.extract_strided_slice %0 {offsets = [2, 0, 0], sizes = [1, 8, 4], strides = [1, 1, 1]} : vector<3x8x4xf32> to vector<1x8x4xf32>
    %69 = vector.shape_cast %68 : vector<1x8x4xf32> to vector<8x4xf32>
    %70 = vector.broadcast %54 : vector<8x1xf32> to vector<8x4xf32>
    %71 = arith.mulf %69, %70 : vector<8x4xf32>
    %72 = arith.truncf %71 : vector<8x4xf32> to vector<8x4xbf16>
    %73 = vector.extract_strided_slice %1 {offsets = [0, 0, 0], sizes = [1, 8, 8], strides = [1, 1, 1]} : vector<3x8x8xf32> to vector<1x8x8xf32>
    %74 = vector.shape_cast %73 : vector<1x8x8xf32> to vector<8x8xf32>
    %75 = vector.broadcast %57 : vector<8x1xf32> to vector<8x8xf32>
    %76 = arith.mulf %74, %75 : vector<8x8xf32>
    %77 = arith.truncf %76 : vector<8x8xf32> to vector<8x8xbf16>
    %78 = vector.extract_strided_slice %1 {offsets = [1, 0, 0], sizes = [1, 8, 8], strides = [1, 1, 1]} : vector<3x8x8xf32> to vector<1x8x8xf32>
    %79 = vector.shape_cast %78 : vector<1x8x8xf32> to vector<8x8xf32>
    %80 = vector.broadcast %57 : vector<8x1xf32> to vector<8x8xf32>
    %81 = arith.mulf %79, %80 : vector<8x8xf32>
    %82 = arith.truncf %81 : vector<8x8xf32> to vector<8x8xbf16>
    %83 = vector.extract_strided_slice %1 {offsets = [2, 0, 0], sizes = [1, 8, 8], strides = [1, 1, 1]} : vector<3x8x8xf32> to vector<1x8x8xf32>
    %84 = vector.shape_cast %83 : vector<1x8x8xf32> to vector<8x8xf32>
    %85 = vector.broadcast %57 : vector<8x1xf32> to vector<8x8xf32>
    %86 = arith.mulf %84, %85 : vector<8x8xf32>
    %87 = arith.truncf %86 : vector<8x8xf32> to vector<8x8xbf16>
    %c0_16 = arith.constant 0 : index
    %c0_17 = arith.constant 0 : index
    %88 = vector.load %arg4[%c0_16, %c0_17] : memref<8x1xf32, #tpu.memory_space<vmem>>, vector<8x1xf32>
    %c0_18 = arith.constant 0 : index
    %c0_19 = arith.constant 0 : index
    %89 = vector.load %arg7[%c0_18, %c0_19] : memref<8x1xf32, #tpu.memory_space<vmem>>, vector<8x1xf32>
    %c0_20 = arith.constant 0 : index
    %c0_21 = arith.constant 0 : index
    %c0_22 = arith.constant 0 : index
    %90 = vector.load %arg1[%c0_20, %c0_21, %c0_22] : memref<1x4x128xf32, #tpu.memory_space<vmem>>, vector<1x4x128xf32>
    %91 = vector.shape_cast %90 : vector<1x4x128xf32> to vector<4x128xf32>
    %92 = arith.truncf %91 : vector<4x128xf32> to vector<4x128xbf16>
    %93 = tpu.iota {dimensions = array<i32: 1>} : vector<8x128xi32>
    %cst_23 = arith.constant 0.000000e+00 : f32
    %94 = vector.broadcast %cst_23 : f32 to vector<8x128xf32>
    %cst_24 = arith.constant dense<0.000000e+00> : vector<8x128xf32>
    %95 = tpu.matmul %62, %92, %cst_24 {dimension_numbers = #tpu.dot_dimension_numbers<[1], [0], [0], [1], [0, 0, 1, 1], [], []>} : vector<8x4xbf16>, vector<4x128xbf16>, vector<8x128xf32> -> vector<8x128xf32>
    %c4_i32 = arith.constant 4 : i32
    %96 = vector.broadcast %c4_i32 : i32 to vector<8x128xi32>
    %97 = arith.cmpi sge, %93, %96 : vector<8x128xi32>
    %c4_i32_25 = arith.constant 4 : i32
    %98 = tpu.dynamic_rotate %95 by %c4_i32_25 dim 1 : vector<8x128xf32>, i32 -> vector<8x128xf32>
    %cst_26 = arith.constant 0.000000e+00 : f32
    %99 = vector.broadcast %cst_26 : f32 to vector<8x128xf32>
    %100 = arith.select %97, %98, %99 : vector<8x128xi1>, vector<8x128xf32>
    %101 = arith.addf %94, %100 : vector<8x128xf32>
    %cst_27 = arith.constant dense<0.000000e+00> : vector<8x128xf32>
    %102 = tpu.matmul %67, %92, %cst_27 {dimension_numbers = #tpu.dot_dimension_numbers<[1], [0], [0], [1], [0, 0, 1, 1], [], []>} : vector<8x4xbf16>, vector<4x128xbf16>, vector<8x128xf32> -> vector<8x128xf32>
    %c2_i32 = arith.constant 2 : i32
    %103 = vector.broadcast %c2_i32 : i32 to vector<8x128xi32>
    %104 = arith.cmpi sge, %93, %103 : vector<8x128xi32>
    %c2_i32_28 = arith.constant 2 : i32
    %105 = tpu.dynamic_rotate %102 by %c2_i32_28 dim 1 : vector<8x128xf32>, i32 -> vector<8x128xf32>
    %cst_29 = arith.constant 0.000000e+00 : f32
    %106 = vector.broadcast %cst_29 : f32 to vector<8x128xf32>
    %107 = arith.select %104, %105, %106 : vector<8x128xi1>, vector<8x128xf32>
    %108 = arith.addf %101, %107 : vector<8x128xf32>
    %cst_30 = arith.constant dense<0.000000e+00> : vector<8x128xf32>
    %109 = tpu.matmul %72, %92, %cst_30 {dimension_numbers = #tpu.dot_dimension_numbers<[1], [0], [0], [1], [0, 0, 1, 1], [], []>} : vector<8x4xbf16>, vector<4x128xbf16>, vector<8x128xf32> -> vector<8x128xf32>
    %110 = arith.addf %108, %109 : vector<8x128xf32>
    %111 = vector.broadcast %88 : vector<8x1xf32> to vector<8x128xf32>
    %112 = arith.addf %110, %111 : vector<8x128xf32>
    %cst_31 = arith.constant 0.000000e+00 : f32
    %113 = vector.broadcast %cst_31 : f32 to vector<8x128xf32>
    %114 = arith.maximumf %112, %113 : vector<8x128xf32>
    %115 = arith.truncf %114 : vector<8x128xf32> to vector<8x128xbf16>
    %cst_32 = arith.constant 0.000000e+00 : f32
    %116 = vector.broadcast %cst_32 : f32 to vector<8x128xf32>
    %cst_33 = arith.constant dense<0.000000e+00> : vector<8x128xf32>
    %117 = tpu.matmul %77, %115, %cst_33 {dimension_numbers = #tpu.dot_dimension_numbers<[1], [0], [0], [1], [0, 0, 1, 1], [], []>} : vector<8x8xbf16>, vector<8x128xbf16>, vector<8x128xf32> -> vector<8x128xf32>
    %c4_i32_34 = arith.constant 4 : i32
    %118 = vector.broadcast %c4_i32_34 : i32 to vector<8x128xi32>
    %119 = arith.cmpi sge, %93, %118 : vector<8x128xi32>
    %c4_i32_35 = arith.constant 4 : i32
    %120 = tpu.dynamic_rotate %117 by %c4_i32_35 dim 1 : vector<8x128xf32>, i32 -> vector<8x128xf32>
    %cst_36 = arith.constant 0.000000e+00 : f32
    %121 = vector.broadcast %cst_36 : f32 to vector<8x128xf32>
    %122 = arith.select %119, %120, %121 : vector<8x128xi1>, vector<8x128xf32>
    %123 = arith.addf %116, %122 : vector<8x128xf32>
    %cst_37 = arith.constant dense<0.000000e+00> : vector<8x128xf32>
    %124 = tpu.matmul %82, %115, %cst_37 {dimension_numbers = #tpu.dot_dimension_numbers<[1], [0], [0], [1], [0, 0, 1, 1], [], []>} : vector<8x8xbf16>, vector<8x128xbf16>, vector<8x128xf32> -> vector<8x128xf32>
    %c2_i32_38 = arith.constant 2 : i32
    %125 = vector.broadcast %c2_i32_38 : i32 to vector<8x128xi32>
    %126 = arith.cmpi sge, %93, %125 : vector<8x128xi32>
    %c2_i32_39 = arith.constant 2 : i32
    %127 = tpu.dynamic_rotate %124 by %c2_i32_39 dim 1 : vector<8x128xf32>, i32 -> vector<8x128xf32>
    %cst_40 = arith.constant 0.000000e+00 : f32
    %128 = vector.broadcast %cst_40 : f32 to vector<8x128xf32>
    %129 = arith.select %126, %127, %128 : vector<8x128xi1>, vector<8x128xf32>
    %130 = arith.addf %123, %129 : vector<8x128xf32>
    %cst_41 = arith.constant dense<0.000000e+00> : vector<8x128xf32>
    %131 = tpu.matmul %87, %115, %cst_41 {dimension_numbers = #tpu.dot_dimension_numbers<[1], [0], [0], [1], [0, 0, 1, 1], [], []>} : vector<8x8xbf16>, vector<8x128xbf16>, vector<8x128xf32> -> vector<8x128xf32>
    %132 = arith.addf %130, %131 : vector<8x128xf32>
    %133 = vector.broadcast %89 : vector<8x1xf32> to vector<8x128xf32>
    %134 = arith.addf %132, %133 : vector<8x128xf32>
    %cst_42 = arith.constant 0.000000e+00 : f32
    %135 = vector.broadcast %cst_42 : f32 to vector<8x128xf32>
    %136 = arith.maximumf %134, %135 : vector<8x128xf32>
    %c0_43 = arith.constant 0 : index
    %c0_44 = arith.constant 0 : index
    %137 = vector.load %arg8[%c0_43, %c0_44] : memref<8x4xf32, #tpu.memory_space<vmem>>, vector<8x4xf32>
    %138 = arith.truncf %137 : vector<8x4xf32> to vector<8x4xbf16>
    %cst_45 = arith.constant dense<0.000000e+00> : vector<8x128xf32>
    %139 = tpu.matmul %138, %92, %cst_45 {dimension_numbers = #tpu.dot_dimension_numbers<[1], [0], [0], [1], [0, 0, 1, 1], [], []>} : vector<8x4xbf16>, vector<4x128xbf16>, vector<8x128xf32> -> vector<8x128xf32>
    %c0_46 = arith.constant 0 : index
    %c0_47 = arith.constant 0 : index
    %140 = vector.load %arg9[%c0_46, %c0_47] : memref<8x1xf32, #tpu.memory_space<vmem>>, vector<8x1xf32>
    %141 = vector.broadcast %140 : vector<8x1xf32> to vector<8x128xf32>
    %142 = arith.addf %139, %141 : vector<8x128xf32>
    %143 = arith.addf %136, %142 : vector<8x128xf32>
    %cst_48 = arith.constant 0.000000e+00 : f32
    %144 = vector.broadcast %cst_48 : f32 to vector<8x128xf32>
    %145 = arith.maximumf %143, %144 : vector<8x128xf32>
    %c0_49 = arith.constant 0 : index
    %c0_50 = arith.constant 0 : index
    %c0_51 = arith.constant 0 : index
    %146 = vector.load %arg10[%c0_49, %c0_50, %c0_51] : memref<1x8x128xf32, #tpu.memory_space<vmem>>, vector<1x8x128xf32>
    %147 = vector.shape_cast %146 : vector<1x8x128xf32> to vector<8x128xf32>
    %148 = vector.shape_cast %145 : vector<8x128xf32> to vector<1x8x128xf32>
    tpu.vector_store %arg10[%c0_49, %c0_50, %c0_51], %148 {strides = array<i32>} : memref<1x8x128xf32, #tpu.memory_space<vmem>>, vector<1x8x128xf32>,
    return
  }
  func.func @transform_0(%arg0: i32) -> (i32, i32, i32) {
    %c0_i32 = arith.constant 0 : i32
    %c0_i32_0 = arith.constant 0 : i32
    %c0_i32_1 = arith.constant 0 : i32
    return %arg0, %c0_i32, %c0_i32_0 : i32, i32, i32
  }
  func.func @transform_1(%arg0: i32) -> (i32, i32, i32) {
    %c0_i32 = arith.constant 0 : i32
    %c0_i32_0 = arith.constant 0 : i32
    %c0_i32_1 = arith.constant 0 : i32
    %c0_i32_2 = arith.constant 0 : i32
    return %c0_i32, %c0_i32_0, %c0_i32_1 : i32, i32, i32
  }
  func.func @transform_2(%arg0: i32) -> (i32, i32) {
    %c0_i32 = arith.constant 0 : i32
    %c0_i32_0 = arith.constant 0 : i32
    %c0_i32_1 = arith.constant 0 : i32
    return %c0_i32, %c0_i32_0 : i32, i32
  }
  func.func @transform_3(%arg0: i32) -> (i32, i32) {
    %c0_i32 = arith.constant 0 : i32
    %c0_i32_0 = arith.constant 0 : i32
    %c0_i32_1 = arith.constant 0 : i32
    return %c0_i32, %c0_i32_0 : i32, i32
  }
  func.func @transform_4(%arg0: i32) -> (i32, i32, i32) {
    %c0_i32 = arith.constant 0 : i32
    %c0_i32_0 = arith.constant 0 : i32
    %c0_i32_1 = arith.constant 0 : i32
    %c0_i32_2 = arith.constant 0 : i32
    return %c0_i32, %c0_i32_0, %c0_i32_1 : i32, i32, i32
  }
  func.func @transform_5(%arg0: i32) -> (i32, i32) {
    %c0_i32 = arith.constant 0 : i32
    %c0_i32_0 = arith.constant 0 : i32
    %c0_i32_1 = arith.constant 0 : i32
    return %c0_i32, %c0_i32_0 : i32, i32
  }
  func.func @transform_6(%arg0: i32) -> (i32, i32) {
    %c0_i32 = arith.constant 0 : i32
    %c0_i32_0 = arith.constant 0 : i32
    %c0_i32_1 = arith.constant 0 : i32
    return %c0_i32, %c0_i32_0 : i32, i32
  }
  func.func @transform_7(%arg0: i32) -> (i32, i32) {
    %c0_i32 = arith.constant 0 : i32
    %c0_i32_0 = arith.constant 0 : i32
    %c0_i32_1 = arith.constant 0 : i32
    return %c0_i32, %c0_i32_0 : i32, i32
  }
  func.func @transform_8(%arg0: i32) -> (i32, i32) {
    %c0_i32 = arith.constant 0 : i32
    %c0_i32_0 = arith.constant 0 : i32
    %c0_i32_1 = arith.constant 0 : i32
    return %c0_i32, %c0_i32_0 : i32, i32
  }
  func.func @transform_9(%arg0: i32) -> (i32, i32, i32) {
    %c0_i32 = arith.constant 0 : i32
    %c0_i32_0 = arith.constant 0 : i32
    %c0_i32_1 = arith.constant 0 : i32
    return %arg0, %c0_i32, %c0_i32_0 : i32, i32, i32
  }
}

</mosaic_0001>

<llo_original>
// kernel: tpu_custom_call.1
$region0: #{tpu_custom_call.1}
  #allocation0 [shape = 'u32[]', space=smem, size = 0x4, offset = 0x4, fixed_abs, tag = 'smem constant byte address 0x4 - core index']
  #allocation1 [shape = 'u32[144,128]{1,0:T(1,128)}', space=vmem, size = 0x12000, scoped, tag = 'internal scratch']
  %s0 = inlined_call_operand.vmem [shape: f32[2,4,128], index: 0, kind: input, shape index: {}]
  %s1 = inlined_call_operand.vmem [shape: f32[3,8,4], index: 1, kind: input, shape index: {}]
  %s2 = inlined_call_operand.vmem [shape: f32[8,1], index: 2, kind: input, shape index: {}]
  %s3 = inlined_call_operand.vmem [shape: f32[8,1], index: 3, kind: input, shape index: {}]
  %s4 = inlined_call_operand.vmem [shape: f32[3,8,8], index: 4, kind: input, shape index: {}]
  %s5 = inlined_call_operand.vmem [shape: f32[8,1], index: 5, kind: input, shape index: {}]
  %s6 = inlined_call_operand.vmem [shape: f32[8,1], index: 6, kind: input, shape index: {}]
  %s7 = inlined_call_operand.vmem [shape: f32[8,4], index: 7, kind: input, shape index: {}]
  %s8 = inlined_call_operand.vmem [shape: f32[8,1], index: 8, kind: input, shape index: {}]
  %s9 = inlined_call_operand.hbm [shape: f32[2,8,128], index: 9, kind: output, shape index: {}]
  %s10 = sld [smem:[#allocation0]]
  $region69: #{tpu_custom_call.1} parent=0
    _
  %s12 = ssub.s32 1, %s10
  %s13 = scalar_select 0, %s12, %s10
  $region1: #{tpu_custom_call.1} parent=0
    #allocation2 [shape = 'u8[8192]{0}', space=vmem, size = 0x2000, scoped, tag = 'output window, operand 0']
    #allocation3 [shape = 's32[2]{0}', space=sflag, size = 0x8, scoped, tag = 'scoped memory for tpu_custom_call.1']
    %14 = vsyncpa [#allocation3], 0
    %s15 = scalar_lea.sflag [#allocation3], 1
    %16 = vsyncpa %s15, 0
    loop: start=0, step=1, limit=4
    $region2: #{tpu_custom_call.1} parent=1 // loop_pre_header
      _
    $region3: #{tpu_custom_call.1} parent=1 // loop_header
      %s18 = sphi 0, %s22
      %p19 = scmp.ge.s32.totalorder %s18, 4
      %s28 = sphi 0, %s30
      %s31 = sphi 0, %s28
      %s32 = sphi 0, %s31
      %s48 = sphi 0, %s32
      %s52 = sphi 0, %s52
      %s54 = sphi 0, %s52
      %s55 = sphi 0, %s54
      %s69 = sphi 0, %s55
      %s73 = sphi 0, %s73
      %s75 = sphi 0, %s73
      %s76 = sphi 0, %s75
      %s90 = sphi 0, %s76
      %s94 = sphi 0, %s94
      %s96 = sphi 0, %s94
      %s97 = sphi 0, %s96
      %s111 = sphi 0, %s97
      %s115 = sphi 0, %s115
      %s117 = sphi 0, %s115
      %s118 = sphi 0, %s117
      %s132 = sphi 0, %s118
      %s136 = sphi 0, %s136
      %s138 = sphi 0, %s136
      %s139 = sphi 0, %s138
      %s153 = sphi 0, %s139
      %s157 = sphi 0, %s157
      %s159 = sphi 0, %s157
      %s160 = sphi 0, %s159
      %s174 = sphi 0, %s160
      %s178 = sphi 0, %s178
      %s180 = sphi 0, %s178
      %s181 = sphi 0, %s180
      %s195 = sphi 0, %s181
      %s199 = sphi 0, %s199
      %s201 = sphi 0, %s199
      %s202 = sphi 0, %s201
      %s216 = sphi 0, %s202
      %s222 = sphi 0, %s224
      %s225 = sphi 0, %s222
      %s226 = sphi 0, %s225
      %s242 = sphi 0, %s226
    $region4: #{tpu_custom_call.1} parent=1 // loop_header_branch
      %21 = sbr.rel (%p19) target = $region8
    $region5: #{tpu_custom_call.1} parent=1 // loop_body
      %s23 = ssub.s32 %s18, 1
      %s24 = ssub.s32 %s18, 2
      %s25 = sadd.s32 %s18, 1
      %s26 = ssub.s32 %s18, %s25
      %p27 = scmp.eq.s32.totalorder %s26, 0
      %s29 = sadd.s32 %s28, 1
      %s30 = scalar_select %p27, %s28, %s29
      %p33 = pneg %p27
      %p34 = scmp.eq.s32.totalorder %s18, 1
      %p35 = por %p33, %p34
      %p36 = scmp.ne.s32.totalorder %s28, %s31
      %p37 = scmp.eq.s32.totalorder %s18, 0
      %p38 = por %p36, %p37
      %p39 = scmp.ne.s32.totalorder %s28, %s31
      %p40 = scmp.eq.s32.totalorder %s23, 1
      %p41 = por %p39, %p40
      %p42 = scmp.ne.s32.totalorder %s31, %s32
      %p43 = scmp.eq.s32.totalorder %s23, 0
      %p44 = por %p42, %p43
      %p45 = scmp.ne.s32.totalorder %s31, %s32
      %p46 = scmp.eq.s32.totalorder %s24, 1
      %p47 = por %p45, %p46
      %p49 = scmp.ne.s32.totalorder %s32, %s48
      %p50 = scmp.eq.s32.totalorder %s24, 0
      %p51 = por %p49, %p50
      %s53 = sadd.s32 %s52, 1
      %p56 = scmp.eq.s32.totalorder %s18, 1
      %p57 = scmp.ne.s32.totalorder %s52, %s54
      %p58 = scmp.eq.s32.totalorder %s18, 0
      %p59 = por %p57, %p58
      %p60 = scmp.ne.s32.totalorder %s52, %s54
      %p61 = scmp.eq.s32.totalorder %s23, 1
      %p62 = por %p60, %p61
      %p63 = scmp.ne.s32.totalorder %s54, %s55
      %p64 = scmp.eq.s32.totalorder %s23, 0
      %p65 = por %p63, %p64
      %p66 = scmp.ne.s32.totalorder %s54, %s55
      %p67 = scmp.eq.s32.totalorder %s24, 1
      %p68 = por %p66, %p67
      %p70 = scmp.ne.s32.totalorder %s55, %s69
      %p71 = scmp.eq.s32.totalorder %s24, 0
      %p72 = por %p70, %p71
      %s74 = sadd.s32 %s73, 1
      %p77 = scmp.eq.s32.totalorder %s18, 1
      %p78 = scmp.ne.s32.totalorder %s73, %s75
      %p79 = scmp.eq.s32.totalorder %s18, 0
      %p80 = por %p78, %p79
      %p81 = scmp.ne.s32.totalorder %s73, %s75
      %p82 = scmp.eq.s32.totalorder %s23, 1
      %p83 = por %p81, %p82
      %p84 = scmp.ne.s32.totalorder %s75, %s76
      %p85 = scmp.eq.s32.totalorder %s23, 0
      %p86 = por %p84, %p85
      %p87 = scmp.ne.s32.totalorder %s75, %s76
      %p88 = scmp.eq.s32.totalorder %s24, 1
      %p89 = por %p87, %p88
      %p91 = scmp.ne.s32.totalorder %s76, %s90
      %p92 = scmp.eq.s32.totalorder %s24, 0
      %p93 = por %p91, %p92
      %s95 = sadd.s32 %s94, 1
      %p98 = scmp.eq.s32.totalorder %s18, 1
      %p99 = scmp.ne.s32.totalorder %s94, %s96
      %p100 = scmp.eq.s32.totalorder %s18, 0
      %p101 = por %p99, %p100
      %p102 = scmp.ne.s32.totalorder %s94, %s96
      %p103 = scmp.eq.s32.totalorder %s23, 1
      %p104 = por %p102, %p103
      %p105 = scmp.ne.s32.totalorder %s96, %s97
      %p106 = scmp.eq.s32.totalorder %s23, 0
      %p107 = por %p105, %p106
      %p108 = scmp.ne.s32.totalorder %s96, %s97
      %p109 = scmp.eq.s32.totalorder %s24, 1
      %p110 = por %p108, %p109
      %p112 = scmp.ne.s32.totalorder %s97, %s111
      %p113 = scmp.eq.s32.totalorder %s24, 0
      %p114 = por %p112, %p113
      %s116 = sadd.s32 %s115, 1
      %p119 = scmp.eq.s32.totalorder %s18, 1
      %p120 = scmp.ne.s32.totalorder %s115, %s117
      %p121 = scmp.eq.s32.totalorder %s18, 0
      %p122 = por %p120, %p121
      %p123 = scmp.ne.s32.totalorder %s115, %s117
      %p124 = scmp.eq.s32.totalorder %s23, 1
      %p125 = por %p123, %p124
      %p126 = scmp.ne.s32.totalorder %s117, %s118
      %p127 = scmp.eq.s32.totalorder %s23, 0
      %p128 = por %p126, %p127
      %p129 = scmp.ne.s32.totalorder %s117, %s118
      %p130 = scmp.eq.s32.totalorder %s24, 1
      %p131 = por %p129, %p130
      %p133 = scmp.ne.s32.totalorder %s118, %s132
      %p134 = scmp.eq.s32.totalorder %s24, 0
      %p135 = por %p133, %p134
      %s137 = sadd.s32 %s136, 1
      %p140 = scmp.eq.s32.totalorder %s18, 1
      %p141 = scmp.ne.s32.totalorder %s136, %s138
      %p142 = scmp.eq.s32.totalorder %s18, 0
      %p143 = por %p141, %p142
      %p144 = scmp.ne.s32.totalorder %s136, %s138
      %p145 = scmp.eq.s32.totalorder %s23, 1
      %p146 = por %p144, %p145
      %p147 = scmp.ne.s32.totalorder %s138, %s139
      %p148 = scmp.eq.s32.totalorder %s23, 0
      %p149 = por %p147, %p148
      %p150 = scmp.ne.s32.totalorder %s138, %s139
      %p151 = scmp.eq.s32.totalorder %s24, 1
      %p152 = por %p150, %p151
      %p154 = scmp.ne.s32.totalorder %s139, %s153
      %p155 = scmp.eq.s32.totalorder %s24, 0
      %p156 = por %p154, %p155
      %s158 = sadd.s32 %s157, 1
      %p161 = scmp.eq.s32.totalorder %s18, 1
      %p162 = scmp.ne.s32.totalorder %s157, %s159
      %p163 = scmp.eq.s32.totalorder %s18, 0
      %p164 = por %p162, %p163
      %p165 = scmp.ne.s32.totalorder %s157, %s159
      %p166 = scmp.eq.s32.totalorder %s23, 1
      %p167 = por %p165, %p166
      %p168 = scmp.ne.s32.totalorder %s159, %s160
      %p169 = scmp.eq.s32.totalorder %s23, 0
      %p170 = por %p168, %p169
      %p171 = scmp.ne.s32.totalorder %s159, %s160
      %p172 = scmp.eq.s32.totalorder %s24, 1
      %p173 = por %p171, %p172
      %p175 = scmp.ne.s32.totalorder %s160, %s174
      %p176 = scmp.eq.s32.totalorder %s24, 0
      %p177 = por %p175, %p176
      %s179 = sadd.s32 %s178, 1
      %p182 = scmp.eq.s32.totalorder %s18, 1
      %p183 = scmp.ne.s32.totalorder %s178, %s180
      %p184 = scmp.eq.s32.totalorder %s18, 0
      %p185 = por %p183, %p184
      %p186 = scmp.ne.s32.totalorder %s178, %s180
      %p187 = scmp.eq.s32.totalorder %s23, 1
      %p188 = por %p186, %p187
      %p189 = scmp.ne.s32.totalorder %s180, %s181
      %p190 = scmp.eq.s32.totalorder %s23, 0
      %p191 = por %p189, %p190
      %p192 = scmp.ne.s32.totalorder %s180, %s181
      %p193 = scmp.eq.s32.totalorder %s24, 1
      %p194 = por %p192, %p193
      %p196 = scmp.ne.s32.totalorder %s181, %s195
      %p197 = scmp.eq.s32.totalorder %s24, 0
      %p198 = por %p196, %p197
      %s200 = sadd.s32 %s199, 1
      %p203 = scmp.eq.s32.totalorder %s18, 1
      %p204 = scmp.ne.s32.totalorder %s199, %s201
      %p205 = scmp.eq.s32.totalorder %s18, 0
      %p206 = por %p204, %p205
      %p207 = scmp.ne.s32.totalorder %s199, %s201
      %p208 = scmp.eq.s32.totalorder %s23, 1
      %p209 = por %p207, %p208
      %p210 = scmp.ne.s32.totalorder %s201, %s202
      %p211 = scmp.eq.s32.totalorder %s23, 0
      %p212 = por %p210, %p211
      %p213 = scmp.ne.s32.totalorder %s201, %s202
      %p214 = scmp.eq.s32.totalorder %s24, 1
      %p215 = por %p213, %p214
      %p217 = scmp.ne.s32.totalorder %s202, %s216
      %p218 = scmp.eq.s32.totalorder %s24, 0
      %p219 = por %p217, %p218
      %s220 = ssub.s32 %s18, %s25
      %p221 = scmp.eq.s32.totalorder %s220, 0
      %s223 = sadd.s32 %s222, 1
      %s224 = scalar_select %p221, %s222, %s223
      %p227 = pneg %p221
      %p228 = scmp.eq.s32.totalorder %s18, 1
      %p229 = por %p227, %p228
      %p230 = scmp.ne.s32.totalorder %s222, %s225
      %p231 = scmp.eq.s32.totalorder %s18, 0
      %p232 = por %p230, %p231
      %p233 = scmp.ne.s32.totalorder %s222, %s225
      %p234 = scmp.eq.s32.totalorder %s23, 1
      %p235 = por %p233, %p234
      %p236 = scmp.ne.s32.totalorder %s225, %s226
      %p237 = scmp.eq.s32.totalorder %s23, 0
      %p238 = por %p236, %p237
      %p239 = scmp.ne.s32.totalorder %s225, %s226
      %p240 = scmp.eq.s32.totalorder %s24, 1
      %p241 = por %p239, %p240
      %p243 = scmp.ne.s32.totalorder %s226, %s242
      %p244 = scmp.eq.s32.totalorder %s24, 0
      %p245 = por %p243, %p244
      %p246 = scmp.le.s32.totalorder 1, %s18
      %p247 = scmp.lt.s32.totalorder %s18, 3
      %p248 = pnand %p246, %p247
      %p249 = pneg %p248
      // Predicated region
      $region9: #{tpu_custom_call.1} parent=5 // pred_check
        _
      $region10: #{tpu_custom_call.1} parent=5 // pred_check_branch
        %251 = sbr.rel (%p248) target = $region12
      $region11: #{tpu_custom_call.1} parent=5 // pred_region
        %s252 = ssub.s32 %s18, 1
        // Predicated region
        $region13: #{tpu_custom_call.1} parent=11 // pred_check
          %p253 = pneg %p65
        $region14: #{tpu_custom_call.1} parent=11 // pred_check_branch
          %255 = sbr.rel (%p253) target = $region16
        $region15: #{tpu_custom_call.1} parent=11 // pred_region
          _
        $region16: #{tpu_custom_call.1} parent=11 // pred_fallthru
          _
        // Predicated region
        $region17: #{tpu_custom_call.1} parent=11 // pred_check
          %p256 = pneg %p86
        $region18: #{tpu_custom_call.1} parent=11 // pred_check_branch
          %258 = sbr.rel (%p256) target = $region20
        $region19: #{tpu_custom_call.1} parent=11 // pred_region
          _
        $region20: #{tpu_custom_call.1} parent=11 // pred_fallthru
          _
        // Predicated region
        $region21: #{tpu_custom_call.1} parent=11 // pred_check
          %p259 = pneg %p107
        $region22: #{tpu_custom_call.1} parent=11 // pred_check_branch
          %261 = sbr.rel (%p259) target = $region24
        $region23: #{tpu_custom_call.1} parent=11 // pred_region
          _
        $region24: #{tpu_custom_call.1} parent=11 // pred_fallthru
          _
        // Predicated region
        $region25: #{tpu_custom_call.1} parent=11 // pred_check
          %p262 = pneg %p128
        $region26: #{tpu_custom_call.1} parent=11 // pred_check_branch
          %264 = sbr.rel (%p262) target = $region28
        $region27: #{tpu_custom_call.1} parent=11 // pred_region
          _
        $region28: #{tpu_custom_call.1} parent=11 // pred_fallthru
          _
        // Predicated region
        $region29: #{tpu_custom_call.1} parent=11 // pred_check
          %p265 = pneg %p149
        $region30: #{tpu_custom_call.1} parent=11 // pred_check_branch
          %267 = sbr.rel (%p265) target = $region32
        $region31: #{tpu_custom_call.1} parent=11 // pred_region
          _
        $region32: #{tpu_custom_call.1} parent=11 // pred_fallthru
          _
        // Predicated region
        $region33: #{tpu_custom_call.1} parent=11 // pred_check
          %p268 = pneg %p170
        $region34: #{tpu_custom_call.1} parent=11 // pred_check_branch
          %270 = sbr.rel (%p268) target = $region36
        $region35: #{tpu_custom_call.1} parent=11 // pred_region
          _
        $region36: #{tpu_custom_call.1} parent=11 // pred_fallthru
          _
        // Predicated region
        $region37: #{tpu_custom_call.1} parent=11 // pred_check
          %p271 = pneg %p191
        $region38: #{tpu_custom_call.1} parent=11 // pred_check_branch
          %273 = sbr.rel (%p271) target = $region40
        $region39: #{tpu_custom_call.1} parent=11 // pred_region
          _
        $region40: #{tpu_custom_call.1} parent=11 // pred_fallthru
          _
        // Predicated region
        $region41: #{tpu_custom_call.1} parent=11 // pred_check
          %p274 = pneg %p212
        $region42: #{tpu_custom_call.1} parent=11 // pred_check_branch
          %276 = sbr.rel (%p274) target = $region44
        $region43: #{tpu_custom_call.1} parent=11 // pred_region
          _
        $region44: #{tpu_custom_call.1} parent=11 // pred_fallthru
          _
      $region12: #{tpu_custom_call.1} parent=5 // pred_fallthru
        _
      %p277 = scmp.lt.s32.totalorder %s18, 2
      // Predicated region
      $region45: #{tpu_custom_call.1} parent=5 // pred_check
        %p278 = pneg %p277
      $region46: #{tpu_custom_call.1} parent=5 // pred_check_branch
        %280 = sbr.rel (%p278) target = $region48
      $region47: #{tpu_custom_call.1} parent=5 // pred_region
        // Predicated region
        $region49: #{tpu_custom_call.1} parent=47 // pred_check
          %p281 = pneg %p38
        $region50: #{tpu_custom_call.1} parent=47 // pred_check_branch
          %283 = sbr.rel (%p281) target = $region52
        $region51: #{tpu_custom_call.1} parent=47 // pred_region
          %p284 = scmp.lt.s32.totalorder %s18, 1
          %s285 = scalar_select %p284, %s18, 1
          %s286 = smul.addr %s285, 4
          %s287 = scalar_lea.vmem %s0, %s286
        $region52: #{tpu_custom_call.1} parent=47 // pred_fallthru
          _
      $region48: #{tpu_custom_call.1} parent=5 // pred_fallthru
        _
      %p288 = scmp.le.s32.totalorder 1, %s18
      %p289 = scmp.lt.s32.totalorder %s18, 3
      %p290 = pnand %p288, %p289
      %p291 = pneg %p290
      // Predicated region
      $region53: #{tpu_custom_call.1} parent=5 // pred_check
        _
      $region54: #{tpu_custom_call.1} parent=5 // pred_check_branch
        %293 = sbr.rel (%p290) target = $region56
      $region55: #{tpu_custom_call.1} parent=5 // pred_region
        %s294 = ssub.s32 %s18, 1
        %p295 = scmp.lt.s32.totalorder %s23, 1
        %s296 = scalar_select %p295, %s23, 1
        %s297 = smul.addr %s296, 4
        %s298 = scalar_lea.vmem %s0, %s297
        %p299 = pneg %p44
        %p300 = pneg %p41
        %p301 = pneg %p65
        %p302 = pneg %p62
        %p303 = pneg %p86
        %p304 = pneg %p83
        %p305 = pneg %p107
        %p306 = pneg %p104
        %p307 = pneg %p128
        %p308 = pneg %p125
        %p309 = pneg %p149
        %p310 = pneg %p146
        %p311 = pneg %p170
        %p312 = pneg %p167
        %p313 = pneg %p191
        %p314 = pneg %p188
        %p315 = pneg %p212
        %p316 = pneg %p209
        %p317 = pneg %p238
        %p318 = pneg %p235
        %s319 = sand.u32 %s225, 1
        %s320 = scalar_lea.sflag [#allocation3], %s319
        %s321 = sand.u32 %s225, 1
        %s322 = smul.addr %s321, 8
        %s323 = scalar_lea.vmem [#allocation2], %s322
        %p324 = scmp.lt.s32.totalorder %s23, 1
        %s325 = scalar_select %p324, %s23, 1
        %s326 = smul.addr %s325, 4
        %s327 = scalar_lea.vmem %s0, %s326
        %v329 = vld [vmem:[%s1] sm:$0xff]
        %v330 = vld [vmem:[%s1 + $0x8] sm:$0xff]
        %v331 = vld [vmem:[%s1 + $0x10] sm:$0xff]
        %v332 = vld [vmem:[%s4] sm:$0xff]
        %v333 = vld [vmem:[%s4 + $0x8] sm:$0xff]
        %v334 = vld [vmem:[%s4 + $0x10] sm:$0xff]
        %v335 = vmul.f32 %v329, %v329
        %vm336 = vcmask 31744
        %v337 = vsel %vm336, %v335, 0.0
        %338 = vadd.xlane.f32.xlu0 %v337
        %v339 = vpop.xlane.xlu0 %338
        %v340 = vadd.f32 %v339, 0.0
        %v341 = vmul.f32 %v332, %v332
        %vm342 = vcmask 64512
        %v343 = vsel %vm342, %v341, 0.0
        %344 = vadd.xlane.f32.xlu0 %v343
        %v345 = vpop.xlane.xlu0 %344
        %v346 = vadd.f32 %v345, 0.0
        %v347 = vmul.f32 %v330, %v330
        %v348 = vsel %vm336, %v347, 0.0
        %349 = vadd.xlane.f32.xlu0 %v348
        %v350 = vpop.xlane.xlu0 %349
        %v351 = vadd.f32 %v340, %v350
        %v352 = vmul.f32 %v333, %v333
        %v353 = vsel %vm342, %v352, 0.0
        %354 = vadd.xlane.f32.xlu0 %v353
        %v355 = vpop.xlane.xlu0 %354
        %v356 = vadd.f32 %v346, %v355
        %v357 = vmul.f32 %v331, %v331
        %v358 = vsel %vm336, %v357, 0.0
        %359 = vadd.xlane.f32.xlu0 %v358
        %v360 = vpop.xlane.xlu0 %359
        %v361 = vadd.f32 %v351, %v360
        %v362 = vmul.f32 %v334, %v334
        %v363 = vsel %vm342, %v362, 0.0
        %364 = vadd.xlane.f32.xlu0 %v363
        %v365 = vpop.xlane.xlu0 %364
        %v366 = vadd.f32 %v356, %v365
        %v367 = vld [vmem:[%s2] sm:$0xff]
        %v368 = vrsqrt.pop %v361
        %v369 = vmul.f32 %v367, %v368
        %v370 = vld [vmem:[%s5] sm:$0xff]
        %v371 = vrsqrt.pop %v366
        %v372 = vmul.f32 %v370, %v371
        %374 = vset.pattern.permute.xlu0 0
        %375 = vperm.xlu0 %374, %v369
        %v376 = vpop.permute.xlu0 %375
        %v378 = vmul.f32 %v329, %v376
        %v379 = vpack.c.bf16 %v378, %v378
        %v380 = vmul.f32 %v330, %v376
        %v381 = vpack.c.bf16 %v380, %v380
        %v382 = vmul.f32 %v331, %v376
        %v383 = vpack.c.bf16 %v382, %v382
        %385 = vset.pattern.permute.xlu0 0
        %386 = vperm.xlu0 %385, %v372
        %v387 = vpop.permute.xlu0 %386
        %v389 = vmul.f32 %v332, %v387
        %v390 = vpack.c.bf16 %v389, %v389
        %v391 = vmul.f32 %v333, %v387
        %v392 = vpack.c.bf16 %v391, %v391
        %v393 = vmul.f32 %v334, %v387
        %v394 = vpack.c.bf16 %v393, %v393
        %v395 = vld [vmem:[%s3] sm:$0xff]
        %v396 = vld [vmem:[%s6] sm:$0xff]
        %v397 = vld [vmem:[%s327] sm:$0xf]
        %v398 = vpack.c.bf16 %v397, %v397
        %v399 = vlaneseq
        %v400 = vand.u32 %v399, 127
        %v402 = vsel %vm336, %v379, 0
        %vm404 = vcmask 1041408
        %v406 = vsel %vm404, %v398, 0
        %408 = vmatprep.subr.bf16.mxu0 0
        %409 = vmatpush1.bf16.msra.mxu0 %v406
        %410 = vmatprep.subr.bf16.mxu0 0
        %411 = vmatpush1.bf16.msra.mxu0 0
        %412 = vmatprep.subr.bf16.mxu0 0
        %413 = vmatpush1.bf16.msra.mxu0 0
        %414 = vmatprep.subr.bf16.mxu0 0
        %415 = vmatpush1.bf16.msra.mxu0 0
        %416 = vmatprep.subr.bf16.mxu0 0
        %417 = vmatpush1.bf16.msra.mxu0 0
        %418 = vmatprep.subr.bf16.mxu0 0
        %419 = vmatpush1.bf16.msra.mxu0 0
        %420 = vmatprep.subr.bf16.mxu0 0
        %421 = vmatpush1.bf16.msra.mxu0 0
        %422 = vmatprep.subr.bf16.mxu0 0
        %423 = vmatpush1.bf16.msra.mxu0 0
        %424 = vmatprep.subr.bf16.mxu0 0
        %425 = vmatpush1.bf16.msra.mxu0 0
        %426 = vmatprep.subr.bf16.mxu0 0
        %427 = vmatpush1.bf16.msra.mxu0 0
        %428 = vmatprep.subr.bf16.mxu0 0
        %429 = vmatpush1.bf16.msra.mxu0 0
        %430 = vmatprep.subr.bf16.mxu0 0
        %431 = vmatpush1.bf16.msra.mxu0 0
        %432 = vmatprep.subr.bf16.mxu0 0
        %433 = vmatpush1.bf16.msra.mxu0 0
        %434 = vmatprep.subr.bf16.mxu0 0
        %435 = vmatpush1.bf16.msra.mxu0 0
        %436 = vmatprep.subr.bf16.mxu0 0
        %437 = vmatpush1.bf16.msra.mxu0 0
        %438 = vmatprep.subr.bf16.mxu0 0
        %439 = vmatpush1.bf16.msra.mxu0 0
        %440 = vmatprep.mubr.bf16.mxu0 0
        %441 = vmatmul.mubr.bf16.gmra.mrb[0].mxu0 %v402
        %v442 = vpop.f32.mrb[0].mxu0
        %v443 = vadd.f32 0.0, %v442
        %v444 = vpop.f32.mrb[0].mxu0
        %v445 = vpop.f32.mrb[0].mxu0
        %v446 = vpop.f32.mrb[0].mxu0
        %447 = vdwg.mxu0
        %vm448 = vcmp.ge.s32.totalorder %v400, 4
        %449 = vrot.lane.b32.xlu0 %v443, 4
        %v450 = vpop.permute.xlu0 %449
        %v451 = vsel %vm448, %v450, 0.0
        %v452 = vadd.f32 %v451, 0.0
        %v454 = vsel %vm336, %v381, 0
        %456 = vmatprep.subr.bf16.mxu0 0
        %457 = vmatpush1.bf16.msra.mxu0 %v406
        %458 = vmatprep.subr.bf16.mxu0 0
        %459 = vmatpush1.bf16.msra.mxu0 0
        %460 = vmatprep.subr.bf16.mxu0 0
        %461 = vmatpush1.bf16.msra.mxu0 0
        %462 = vmatprep.subr.bf16.mxu0 0
        %463 = vmatpush1.bf16.msra.mxu0 0
        %464 = vmatprep.subr.bf16.mxu0 0
        %465 = vmatpush1.bf16.msra.mxu0 0
        %466 = vmatprep.subr.bf16.mxu0 0
        %467 = vmatpush1.bf16.msra.mxu0 0
        %468 = vmatprep.subr.bf16.mxu0 0
        %469 = vmatpush1.bf16.msra.mxu0 0
        %470 = vmatprep.subr.bf16.mxu0 0
        %471 = vmatpush1.bf16.msra.mxu0 0
        %472 = vmatprep.subr.bf16.mxu0 0
        %473 = vmatpush1.bf16.msra.mxu0 0
        %474 = vmatprep.subr.bf16.mxu0 0
        %475 = vmatpush1.bf16.msra.mxu0 0
        %476 = vmatprep.subr.bf16.mxu0 0
        %477 = vmatpush1.bf16.msra.mxu0 0
        %478 = vmatprep.subr.bf16.mxu0 0
        %479 = vmatpush1.bf16.msra.mxu0 0
        %480 = vmatprep.subr.bf16.mxu0 0
        %481 = vmatpush1.bf16.msra.mxu0 0
        %482 = vmatprep.subr.bf16.mxu0 0
        %483 = vmatpush1.bf16.msra.mxu0 0
        %484 = vmatprep.subr.bf16.mxu0 0
        %485 = vmatpush1.bf16.msra.mxu0 0
        %486 = vmatprep.subr.bf16.mxu0 0
        %487 = vmatpush1.bf16.msra.mxu0 0
        %488 = vmatprep.mubr.bf16.mxu0 0
        %489 = vmatmul.mubr.bf16.gmra.mrb[0].mxu0 %v454
        %v490 = vpop.f32.mrb[0].mxu0
        %v491 = vadd.f32 0.0, %v490
        %v492 = vpop.f32.mrb[0].mxu0
        %v493 = vpop.f32.mrb[0].mxu0
        %v494 = vpop.f32.mrb[0].mxu0
        %495 = vdwg.mxu0
        %vm496 = vcmp.ge.s32.totalorder %v400, 2
        %497 = vrot.lane.b32.xlu0 %v491, 2
        %v498 = vpop.permute.xlu0 %497
        %v499 = vsel %vm496, %v498, 0.0
        %v500 = vadd.f32 %v452, %v499
        %v502 = vsel %vm336, %v383, 0
        %504 = vmatprep.subr.bf16.mxu0 0
        %505 = vmatpush1.bf16.msra.mxu0 %v406
        %506 = vmatprep.subr.bf16.mxu0 0
        %507 = vmatpush1.bf16.msra.mxu0 0
        %508 = vmatprep.subr.bf16.mxu0 0
        %509 = vmatpush1.bf16.msra.mxu0 0
        %510 = vmatprep.subr.bf16.mxu0 0
        %511 = vmatpush1.bf16.msra.mxu0 0
        %512 = vmatprep.subr.bf16.mxu0 0
        %513 = vmatpush1.bf16.msra.mxu0 0
        %514 = vmatprep.subr.bf16.mxu0 0
        %515 = vmatpush1.bf16.msra.mxu0 0
        %516 = vmatprep.subr.bf16.mxu0 0
        %517 = vmatpush1.bf16.msra.mxu0 0
        %518 = vmatprep.subr.bf16.mxu0 0
        %519 = vmatpush1.bf16.msra.mxu0 0
        %520 = vmatprep.subr.bf16.mxu0 0
        %521 = vmatpush1.bf16.msra.mxu0 0
        %522 = vmatprep.subr.bf16.mxu0 0
        %523 = vmatpush1.bf16.msra.mxu0 0
        %524 = vmatprep.subr.bf16.mxu0 0
        %525 = vmatpush1.bf16.msra.mxu0 0
        %526 = vmatprep.subr.bf16.mxu0 0
        %527 = vmatpush1.bf16.msra.mxu0 0
        %528 = vmatprep.subr.bf16.mxu0 0
        %529 = vmatpush1.bf16.msra.mxu0 0
        %530 = vmatprep.subr.bf16.mxu0 0
        %531 = vmatpush1.bf16.msra.mxu0 0
        %532 = vmatprep.subr.bf16.mxu0 0
        %533 = vmatpush1.bf16.msra.mxu0 0
        %534 = vmatprep.subr.bf16.mxu0 0
        %535 = vmatpush1.bf16.msra.mxu0 0
        %536 = vmatprep.mubr.bf16.mxu0 0
        %537 = vmatmul.mubr.bf16.gmra.mrb[0].mxu0 %v502
        %v538 = vpop.f32.mrb[0].mxu0
        %v539 = vadd.f32 0.0, %v538
        %v540 = vpop.f32.mrb[0].mxu0
        %v541 = vpop.f32.mrb[0].mxu0
        %v542 = vpop.f32.mrb[0].mxu0
        %543 = vdwg.mxu0
        %v544 = vadd.f32 %v500, %v539
        %546 = vset.pattern.permute.xlu0 0
        %547 = vperm.xlu0 %546, %v395
        %v548 = vpop.permute.xlu0 %547
        %v550 = vadd.f32 %v544, %v548
        %v551 = vmax.f32 %v550, 0.0
        %v552 = vpack.c.bf16 %v551, %v551
        %v554 = vsel %vm342, %v390, 0
        %vm556 = vcmask 1043456
        %v558 = vsel %vm556, %v552, 0
        %560 = vmatprep.subr.bf16.mxu0 0
        %561 = vmatpush1.bf16.msra.mxu0 %v558
        %562 = vmatprep.subr.bf16.mxu0 0
        %563 = vmatpush1.bf16.msra.mxu0 0
        %564 = vmatprep.subr.bf16.mxu0 0
        %565 = vmatpush1.bf16.msra.mxu0 0
        %566 = vmatprep.subr.bf16.mxu0 0
        %567 = vmatpush1.bf16.msra.mxu0 0
        %568 = vmatprep.subr.bf16.mxu0 0
        %569 = vmatpush1.bf16.msra.mxu0 0
        %570 = vmatprep.subr.bf16.mxu0 0
        %571 = vmatpush1.bf16.msra.mxu0 0
        %572 = vmatprep.subr.bf16.mxu0 0
        %573 = vmatpush1.bf16.msra.mxu0 0
        %574 = vmatprep.subr.bf16.mxu0 0
        %575 = vmatpush1.bf16.msra.mxu0 0
        %576 = vmatprep.subr.bf16.mxu0 0
        %577 = vmatpush1.bf16.msra.mxu0 0
        %578 = vmatprep.subr.bf16.mxu0 0
        %579 = vmatpush1.bf16.msra.mxu0 0
        %580 = vmatprep.subr.bf16.mxu0 0
        %581 = vmatpush1.bf16.msra.mxu0 0
        %582 = vmatprep.subr.bf16.mxu0 0
        %583 = vmatpush1.bf16.msra.mxu0 0
        %584 = vmatprep.subr.bf16.mxu0 0
        %585 = vmatpush1.bf16.msra.mxu0 0
        %586 = vmatprep.subr.bf16.mxu0 0
        %587 = vmatpush1.bf16.msra.mxu0 0
        %588 = vmatprep.subr.bf16.mxu0 0
        %589 = vmatpush1.bf16.msra.mxu0 0
        %590 = vmatprep.subr.bf16.mxu0 0
        %591 = vmatpush1.bf16.msra.mxu0 0
        %592 = vmatprep.mubr.bf16.mxu0 0
        %593 = vmatmul.mubr.bf16.gmra.mrb[0].mxu0 %v554
        %v594 = vpop.f32.mrb[0].mxu0
        %v595 = vadd.f32 0.0, %v594
        %v596 = vpop.f32.mrb[0].mxu0
        %v597 = vpop.f32.mrb[0].mxu0
        %v598 = vpop.f32.mrb[0].mxu0
        %599 = vdwg.mxu0
        %600 = vrot.lane.b32.xlu0 %v595, 4
        %v601 = vpop.permute.xlu0 %600
        %v602 = vsel %vm448, %v601, 0.0
        %v603 = vadd.f32 %v602, 0.0
        %v605 = vsel %vm342, %v392, 0
        %607 = vmatprep.subr.bf16.mxu0 0
        %608 = vmatpush1.bf16.msra.mxu0 %v558
        %609 = vmatprep.subr.bf16.mxu0 0
        %610 = vmatpush1.bf16.msra.mxu0 0
        %611 = vmatprep.subr.bf16.mxu0 0
        %612 = vmatpush1.bf16.msra.mxu0 0
        %613 = vmatprep.subr.bf16.mxu0 0
        %614 = vmatpush1.bf16.msra.mxu0 0
        %615 = vmatprep.subr.bf16.mxu0 0
        %616 = vmatpush1.bf16.msra.mxu0 0
        %617 = vmatprep.subr.bf16.mxu0 0
        %618 = vmatpush1.bf16.msra.mxu0 0
        %619 = vmatprep.subr.bf16.mxu0 0
        %620 = vmatpush1.bf16.msra.mxu0 0
        %621 = vmatprep.subr.bf16.mxu0 0
        %622 = vmatpush1.bf16.msra.mxu0 0
        %623 = vmatprep.subr.bf16.mxu0 0
        %624 = vmatpush1.bf16.msra.mxu0 0
        %625 = vmatprep.subr.bf16.mxu0 0
        %626 = vmatpush1.bf16.msra.mxu0 0
        %627 = vmatprep.subr.bf16.mxu0 0
        %628 = vmatpush1.bf16.msra.mxu0 0
        %629 = vmatprep.subr.bf16.mxu0 0
        %630 = vmatpush1.bf16.msra.mxu0 0
        %631 = vmatprep.subr.bf16.mxu0 0
        %632 = vmatpush1.bf16.msra.mxu0 0
        %633 = vmatprep.subr.bf16.mxu0 0
        %634 = vmatpush1.bf16.msra.mxu0 0
        %635 = vmatprep.subr.bf16.mxu0 0
        %636 = vmatpush1.bf16.msra.mxu0 0
        %637 = vmatprep.subr.bf16.mxu0 0
        %638 = vmatpush1.bf16.msra.mxu0 0
        %639 = vmatprep.mubr.bf16.mxu0 0
        %640 = vmatmul.mubr.bf16.gmra.mrb[0].mxu0 %v605
        %v641 = vpop.f32.mrb[0].mxu0
        %v642 = vadd.f32 0.0, %v641
        %v643 = vpop.f32.mrb[0].mxu0
        %v644 = vpop.f32.mrb[0].mxu0
        %v645 = vpop.f32.mrb[0].mxu0
        %646 = vdwg.mxu0
        %647 = vrot.lane.b32.xlu0 %v642, 2
        %v648 = vpop.permute.xlu0 %647
        %v649 = vsel %vm496, %v648, 0.0
        %v650 = vadd.f32 %v603, %v649
        %v652 = vsel %vm342, %v394, 0
        %654 = vmatprep.subr.bf16.mxu0 0
        %655 = vmatpush1.bf16.msra.mxu0 %v558
        %656 = vmatprep.subr.bf16.mxu0 0
        %657 = vmatpush1.bf16.msra.mxu0 0
        %658 = vmatprep.subr.bf16.mxu0 0
        %659 = vmatpush1.bf16.msra.mxu0 0
        %660 = vmatprep.subr.bf16.mxu0 0
        %661 = vmatpush1.bf16.msra.mxu0 0
        %662 = vmatprep.subr.bf16.mxu0 0
        %663 = vmatpush1.bf16.msra.mxu0 0
        %664 = vmatprep.subr.bf16.mxu0 0
        %665 = vmatpush1.bf16.msra.mxu0 0
        %666 = vmatprep.subr.bf16.mxu0 0
        %667 = vmatpush1.bf16.msra.mxu0 0
        %668 = vmatprep.subr.bf16.mxu0 0
        %669 = vmatpush1.bf16.msra.mxu0 0
        %670 = vmatprep.subr.bf16.mxu0 0
        %671 = vmatpush1.bf16.msra.mxu0 0
        %672 = vmatprep.subr.bf16.mxu0 0
        %673 = vmatpush1.bf16.msra.mxu0 0
        %674 = vmatprep.subr.bf16.mxu0 0
        %675 = vmatpush1.bf16.msra.mxu0 0
        %676 = vmatprep.subr.bf16.mxu0 0
        %677 = vmatpush1.bf16.msra.mxu0 0
        %678 = vmatprep.subr.bf16.mxu0 0
        %679 = vmatpush1.bf16.msra.mxu0 0
        %680 = vmatprep.subr.bf16.mxu0 0
        %681 = vmatpush1.bf16.msra.mxu0 0
        %682 = vmatprep.subr.bf16.mxu0 0
        %683 = vmatpush1.bf16.msra.mxu0 0
        %684 = vmatprep.subr.bf16.mxu0 0
        %685 = vmatpush1.bf16.msra.mxu0 0
        %686 = vmatprep.mubr.bf16.mxu0 0
        %687 = vmatmul.mubr.bf16.gmra.mrb[0].mxu0 %v652
        %v688 = vpop.f32.mrb[0].mxu0
        %v689 = vadd.f32 0.0, %v688
        %v690 = vpop.f32.mrb[0].mxu0
        %v691 = vpop.f32.mrb[0].mxu0
        %v692 = vpop.f32.mrb[0].mxu0
        %693 = vdwg.mxu0
        %v694 = vadd.f32 %v650, %v689
        %696 = vset.pattern.permute.xlu0 0
        %697 = vperm.xlu0 %696, %v396
        %v698 = vpop.permute.xlu0 %697
        %v700 = vadd.f32 %v694, %v698
        %v701 = vmax.f32 %v700, 0.0
        %v702 = vld [vmem:[%s7] sm:$0xff]
        %v703 = vpack.c.bf16 %v702, %v702
        %v704 = vld [vmem:[%s8] sm:$0xff]
        %706 = vset.pattern.permute.xlu0 0
        %707 = vperm.xlu0 %706, %v704
        %v708 = vpop.permute.xlu0 %707
        %v711 = vsel %vm336, %v703, 0
        %713 = vmatprep.subr.bf16.mxu0 0
        %714 = vmatpush1.bf16.msra.mxu0 %v406
        %715 = vmatprep.subr.bf16.mxu0 0
        %716 = vmatpush1.bf16.msra.mxu0 0
        %717 = vmatprep.subr.bf16.mxu0 0
        %718 = vmatpush1.bf16.msra.mxu0 0
        %719 = vmatprep.subr.bf16.mxu0 0
        %720 = vmatpush1.bf16.msra.mxu0 0
        %721 = vmatprep.subr.bf16.mxu0 0
        %722 = vmatpush1.bf16.msra.mxu0 0
        %723 = vmatprep.subr.bf16.mxu0 0
        %724 = vmatpush1.bf16.msra.mxu0 0
        %725 = vmatprep.subr.bf16.mxu0 0
        %726 = vmatpush1.bf16.msra.mxu0 0
        %727 = vmatprep.subr.bf16.mxu0 0
        %728 = vmatpush1.bf16.msra.mxu0 0
        %729 = vmatprep.subr.bf16.mxu0 0
        %730 = vmatpush1.bf16.msra.mxu0 0
        %731 = vmatprep.subr.bf16.mxu0 0
        %732 = vmatpush1.bf16.msra.mxu0 0
        %733 = vmatprep.subr.bf16.mxu0 0
        %734 = vmatpush1.bf16.msra.mxu0 0
        %735 = vmatprep.subr.bf16.mxu0 0
        %736 = vmatpush1.bf16.msra.mxu0 0
        %737 = vmatprep.subr.bf16.mxu0 0
        %738 = vmatpush1.bf16.msra.mxu0 0
        %739 = vmatprep.subr.bf16.mxu0 0
        %740 = vmatpush1.bf16.msra.mxu0 0
        %741 = vmatprep.subr.bf16.mxu0 0
        %742 = vmatpush1.bf16.msra.mxu0 0
        %743 = vmatprep.subr.bf16.mxu0 0
        %744 = vmatpush1.bf16.msra.mxu0 0
        %745 = vmatprep.mubr.bf16.mxu0 0
        %746 = vmatmul.mubr.bf16.gmra.mrb[0].mxu0 %v711
        %v747 = vpop.f32.mrb[0].mxu0
        %v748 = vadd.f32 %v708, %v747
        %v749 = vpop.f32.mrb[0].mxu0
        %v750 = vpop.f32.mrb[0].mxu0
        %v751 = vpop.f32.mrb[0].mxu0
        %752 = vdwg.mxu0
        %v753 = vadd.f32 %v701, %v748
        %v754 = vmax.f32 %v753, 0.0
        %755 = vst [vmem:[%s323] sm:$0xff] %v754
        %s756 = sand.u32 %s225, 1
        %s757 = scalar_lea.sflag [#allocation3], %s756
        %s758 = sand.u32 %s225, 1
        %s759 = smul.addr %s758, 8
        %s760 = scalar_lea.vmem [#allocation2], %s759
        // Predicated region
        $region57: #{tpu_custom_call.1} parent=55 // pred_check
          %p761 = pneg %p235
        $region58: #{tpu_custom_call.1} parent=55 // pred_check_branch
          %763 = sbr.rel (%p761) target = $region60
        $region59: #{tpu_custom_call.1} parent=55 // pred_region
          %s765 = ssub.s32 128, 128
          %766 = vsyncadd %s757, %s765
          %s767 = smul.addr %s23, 128
          %s768 = scalar_lea.hbm %s9, %s767
          %s770 = sshll.u32 %s760, 4
          %s771 = int_to_ptr.vmem [resolvable:$true] %s770
          %773 = dma.vmem_to_hbm [thread:$0]  %s771, 128, %s768, %s757
        $region60: #{tpu_custom_call.1} parent=55 // pred_fallthru
          _
      $region56: #{tpu_custom_call.1} parent=5 // pred_fallthru
        _
      %p774 = scmp.le.s32.totalorder 2, %s18
      // Predicated region
      $region61: #{tpu_custom_call.1} parent=5 // pred_check
        %p775 = pneg %p774
      $region62: #{tpu_custom_call.1} parent=5 // pred_check_branch
        %777 = sbr.rel (%p775) target = $region64
      $region63: #{tpu_custom_call.1} parent=5 // pred_region
        %s778 = ssub.s32 %s18, 2
        // Predicated region
        $region65: #{tpu_custom_call.1} parent=63 // pred_check
          %p779 = pneg %p241
        $region66: #{tpu_custom_call.1} parent=63 // pred_check_branch
          %781 = sbr.rel (%p779) target = $region68
        $region67: #{tpu_custom_call.1} parent=63 // pred_region
          %s782 = sand.u32 %s226, 1
          %s783 = scalar_lea.sflag [#allocation3], %s782
          %s784 = sand.u32 %s226, 1
          %s785 = smul.addr %s784, 8
          %s786 = scalar_lea.vmem [#allocation2], %s785
          %787 = dma.done %s783, 128
        $region68: #{tpu_custom_call.1} parent=63 // pred_fallthru
          _
      $region64: #{tpu_custom_call.1} parent=5 // pred_fallthru
        _
    $region6: #{tpu_custom_call.1} parent=1 // loop_footer
      %s22 = sadd.s32 1, %s18
    $region7: #{tpu_custom_call.1} parent=1 // loop_footer_branch
      %17 = sbr.rel target = $region3
    $region8: #{tpu_custom_call.1} parent=1 // loop_exit
      _
    %788 = vsyncpa [#allocation3], 1
    %s789 = scalar_lea.sflag [#allocation3], 1
    %790 = vsyncpa %s789, 1

</llo_original>
